<compile_context>
chip_gen: v6e
topology: v6e:2x2x1
jax: 0.10.0
libtpu: 0.0.40
codegen_flags: <defaults>
</compile_context>

<pallas_src>
import jax
import jax.numpy as jnp
from jax.experimental import pallas as pl
from jax.experimental.pallas import tpu as pltpu


# Columns of the packed per-(b, c)-row parameter tile (one (BC, 128) f32 block).
_P_SIGMA = 0       # sigma per row                      (pre-mask noise_scaling)
_P_INV_DEN = 1     # 1 / (sigma^2 + 1)                  (synthetic UNet)
_P_BIAS_EFF = 2    # bias_u + (bias_c - bias_u) * cond_scale   (folded CFG combine)
_P_LNU_SCALE = 3   # (1 - inv_den) / sigma              (folded last_noise_uncond)
_P_LNU_BIAS = 4    # -bias_u / sigma


# ----------------------------------------------------------------------------------
# Fused Pallas kernel (static variants over has_mask / need_lnu)
# ----------------------------------------------------------------------------------

def _make_fused_kernel(has_mask: bool, need_lnu: bool):
    def kernel(*refs):
        if has_mask:
            x_ref, mask_ref, init_ref, noise_ref, params_ref = refs[:5]
            out_refs = refs[5:]
        else:
            x_ref, params_ref = refs[:2]
            out_refs = refs[2:]
        den_ref = out_refs[0]

        p = params_ref[...]                              # (BC, 128) f32, fetched once
        inv_den = p[:, _P_INV_DEN:_P_INV_DEN + 1]        # (BC, 1) -> lane broadcast
        bias_eff = p[:, _P_BIAS_EFF:_P_BIAS_EFF + 1]

        x = x_ref[...].astype(jnp.float32)
        if has_mask:
            # noise_scaling (eps predictor, max_denoise=False): init + noise * sigma
            # Blend uses nmask == 1 - mask, so nmask is never streamed from HBM:
            #   x * nmask + noisy_init * mask  ==  x + (noisy_init - x) * mask
            sigma = p[:, _P_SIGMA:_P_SIGMA + 1]
            mask = mask_ref[...].astype(jnp.float32)
            init = init_ref[...].astype(jnp.float32)
            noise = noise_ref[...].astype(jnp.float32)
            x = x + (init + noise * sigma - x) * mask

        # Synthetic stand-in for the wrapped UNet + CFG combine, folded host-side:
        #   cond_pred   = x*inv_den + bias_c
        #   uncond_pred = x*inv_den + bias_u
        #   denoised    = uncond_pred + (cond_pred - uncond_pred)*cond_scale
        #               = x*inv_den + bias_eff
        # TODO(synk): the real inner_model (UNet via sampling_function) is external to
        #             CFGDenoiser; replaced by a deterministic synthetic denoiser.
        # TODO(synk): the general multi-cond composition loop (conds_list with
        #             arbitrary (index, weight) pairs) is dynamic Python; only the
        #             standard single-cond / weight=1 composition is implemented.
        denoised = x * inv_den + bias_eff

        if need_lnu:
            # last_noise_uncond = (x - uncond_pred) / sigma, folded to x*a + b.
            lnu_scale = p[:, _P_LNU_SCALE:_P_LNU_SCALE + 1]
            lnu_bias = p[:, _P_LNU_BIAS:_P_LNU_BIAS + 1]
            lnu_ref = out_refs[1]
            lnu_ref[...] = (x * lnu_scale + lnu_bias).astype(lnu_ref.dtype)

        if has_mask:
            # denoised*nmask + init*mask  ==  denoised + (init - denoised)*mask
            denoised = denoised + (init - denoised) * mask
        den_ref[...] = denoised.astype(den_ref.dtype)

    return kernel


def _pick_tile_hw(hw: int, max_tile: int = 8192, min_blocks: int = 2) -> int:
    """Largest lane-aligned tile (multiple of 128, <= max_tile) dividing hw.

    Keeps at least `min_blocks` grid steps when possible so the "parallel" grid axis
    can shard across both TensorCores on v7x.
    """
    if hw % 128 != 0:
        return hw                      # block == full dim is always allowed
    cap = min(max_tile, hw)
    if hw >= min_blocks * 128:
        cap = min(cap, hw // min_blocks)
    t = (cap // 128) * 128
    while hw % t:
        t -= 128
    return t


def fused_cfg_denoise(x2d, params, mask2d=None, init2d=None, noise2d=None, *,
                      need_lnu=False, out_dtype=None, lnu_dtype=jnp.float32,
                      max_tile_hw=8192):
    """Single pipelined pallas_call over HW tiles implementing the whole forward."""
    BC, HW = x2d.shape
    has_mask = mask2d is not None
    out_dtype = out_dtype or x2d.dtype

    tile = _pick_tile_hw(HW, max_tile_hw)
    grid = (HW // tile,)

    latent_spec = pl.BlockSpec((BC, tile), lambda i: (0, i))
    params_spec = pl.BlockSpec((BC, 128), lambda i: (0, 0))   # constant block -> one DMA

    if has_mask:
        inputs = (x2d, mask2d, init2d, noise2d, params)
        in_specs = [latent_spec] * 4 + [params_spec]
    else:
        inputs = (x2d, params)
        in_specs = [latent_spec, params_spec]

    out_shapes = [jax.ShapeDtypeStruct((BC, HW), out_dtype)]
    out_specs = [latent_spec]
    if need_lnu:
        out_shapes.append(jax.ShapeDtypeStruct((BC, HW), lnu_dtype))
        out_specs.append(latent_spec)

    outs = pl.pallas_call(
        _make_fused_kernel(has_mask, need_lnu),
        grid=grid,
        in_specs=in_specs,
        out_specs=tuple(out_specs),
        out_shape=tuple(out_shapes),
        compiler_params=pltpu.CompilerParams(
            dimension_semantics=("parallel",),
            vmem_limit_bytes=32 * 1024 * 1024,
        ),
    )(*inputs)

    if need_lnu:
        return outs[0], outs[1]
    return outs[0], None


# ----------------------------------------------------------------------------------
# Glue (pad_cond / pad_cond_uncond / CFGDenoiser forward orchestration)
# ----------------------------------------------------------------------------------

def pad_cond(tensor, repeats, empty):
    # torch.cat([tensor, empty.repeat((tensor.shape[0], repeats, 1))], axis=1)
    return jnp.concatenate(
        [tensor, jnp.tile(empty, (tensor.shape[0], repeats, 1))], axis=1)


def pad_cond_uncond(cond, uncond, empty):
    num_repeats = (cond.shape[1] - uncond.shape[1]) // empty.shape[1]
    padded = False
    if num_repeats < 0:
        cond = pad_cond(cond, -num_repeats, empty)
        padded = True
    elif num_repeats > 0:
        uncond = pad_cond(uncond, num_repeats, empty)
        padded = True
    return cond, uncond, padded


class CFGDenoiser:
    """JAX/Pallas re-implementation of the CFG denoiser forward pass."""

    def __init__(self, mask, nmask, init_latent, empty_prompt, unet_w,
                 step=0, total_steps=20, need_last_noise_uncond=True,
                 storage_dtype=None, lnu_dtype=jnp.float32):
        self.has_mask = mask is not None
        if self.has_mask:
            B, C, H, W = mask.shape
            # Flatten the per-run constants ONCE (not every sampler step).  nmask is
            # assumed == 1 - mask (as in the module's usage) and is therefore never
            # stored or streamed: the kernel uses x + (target - x)*mask.
            # storage_dtype (e.g. jnp.bfloat16) halves the HBM bytes of these streams
            # on this memory-bound kernel; the kernel upcasts to f32 internally.
            sd = storage_dtype
            self._mask2d = mask.reshape(B * C, H * W).astype(sd) if sd else mask.reshape(B * C, H * W)
            self._init2d = init_latent.reshape(B * C, H * W).astype(sd) if sd else init_latent.reshape(B * C, H * W)
        else:
            self._mask2d = self._init2d = None
        self.mask = mask
        self.nmask = nmask
        self.init_latent = init_latent
        self.empty = empty_prompt          # (1, T_e, D)
        self.unet_w = unet_w               # (D, C)
        self.step = step
        self.total_steps = total_steps
        self.need_last_noise_uncond = need_last_noise_uncond
        self.last_noise_uncond = None
        self.padded_cond_uncond = False
        self.storage_dtype = storage_dtype
        self.lnu_dtype = lnu_dtype         # bf16 here cuts the largest output stream on v5e

    def __call__(self, x, sigma, uncond, cond, cond_scale, s_min_uncond, image_cond, noise):
        B, C, H, W = x.shape
        BC, HW = B * C, H * W
        orig_dtype = x.dtype

        # pad_cond_uncond (host-side shape glue)
        cond, uncond, self.padded_cond_uncond = pad_cond_uncond(cond, uncond, self.empty)

        # cond_scale overrides (NGMS).
        # TODO(synk): self.step is a Python int, so if a caller jits around __call__
        #             the step%2 gate forces a retrace; pass step parity as a traced
        #             scalar (or pre-build two jitted variants) to avoid it.
        cond_scale = jnp.asarray(cond_scale, jnp.float32)
        if self.step % 2:
            s_min = jnp.asarray(s_min_uncond, jnp.float32)
            cond_scale = jnp.where(
                (s_min > 0) & (sigma.astype(jnp.float32)[0] < s_min), 1.0, cond_scale)

        # Synthetic UNet conditioning bias (stand-in for the external inner_model).
        # TODO(synk): real UNet is external; this tiny projection is done in plain JAX
        #             (far below MXU granularity) and shipped as per-row scalars.
        pooled_c = jnp.mean(cond.astype(jnp.float32), axis=1)        # (B, D)
        pooled_u = jnp.mean(uncond.astype(jnp.float32), axis=1)      # (B, D)
        w = self.unet_w.astype(jnp.float32)
        bias_c = (0.1 * jnp.tanh(pooled_c @ w)).reshape(BC)          # (BC,)
        bias_u = (0.1 * jnp.tanh(pooled_u @ w)).reshape(BC)          # (BC,)

        # Pack all per-(b, c)-row scalars into one (BC, 128) f32 tile: one tiny DMA.
        # The CFG combine and last_noise_uncond scalars are folded here, so the kernel
        # body is ~2 VALU ops per element and purely HBM-bandwidth-bound.
        sigma_row = jnp.repeat(sigma.astype(jnp.float32), C)          # (BC,)
        inv_den = 1.0 / (sigma_row * sigma_row + 1.0)
        # TODO(synk): 1/sigma is zero-guarded (returns 0 at sigma==0) instead of
        #             producing inf/nan like the literal torch division.
        inv_sig = jnp.where(sigma_row != 0, 1.0 / sigma_row, 0.0)
        bias_eff = bias_u + (bias_c - bias_u) * cond_scale

        params = jnp.zeros((BC, 128), jnp.float32)
        params = params.at[:, _P_SIGMA].set(sigma_row)
        params = params.at[:, _P_INV_DEN].set(inv_den)
        params = params.at[:, _P_BIAS_EFF].set(bias_eff)
        params = params.at[:, _P_LNU_SCALE].set((1.0 - inv_den) * inv_sig)
        params = params.at[:, _P_LNU_BIAS].set(-bias_u * inv_sig)

        x2d = x.reshape(BC, HW)
        noise2d = noise.reshape(BC, HW) if self.has_mask else None
        if self.has_mask and self.storage_dtype is not None:
            noise2d = noise2d.astype(self.storage_dtype)

        denoised2d, lnu2d = fused_cfg_denoise(
            x2d, params,
            mask2d=self._mask2d, init2d=self._init2d, noise2d=noise2d,
            need_lnu=self.need_last_noise_uncond,
            out_dtype=orig_dtype, lnu_dtype=self.lnu_dtype,
        )

        if self.need_last_noise_uncond:
            self.last_noise_uncond = lnu2d.reshape(B, C, H, W)

        self.step += 1
        return denoised2d.reshape(B, C, H, W)


# ----------------------------------------------------------------------------------
# Demo
# ----------------------------------------------------------------------------------

if __name__ == "__main__":
    B, C, H, W = 2, 4, 16, 16
    T_COND, T_UNCOND, T_EMPTY, D = 8, 4, 4, 32

    key = jax.random.PRNGKey(0)
    ks = jax.random.split(key, 10)

    x = jax.random.normal(ks[0], (B, C, H, W), jnp.float32)
    sigma = jnp.array([2.5, 1.5], jnp.float32)
    cond = jax.random.normal(ks[1], (B, T_COND, D), jnp.float32)
    uncond = jax.random.normal(ks[2], (B, T_UNCOND, D), jnp.float32)
    image_cond = jax.random.normal(ks[3], (B, C, H, W), jnp.float32)   # unused by synthetic UNet
    empty_prompt = jax.random.normal(ks[4], (1, T_EMPTY, D), jnp.float32)

    mask = (jax.random.uniform(ks[5], (B, C, H, W)) > 0.5).astype(jnp.float32)
    nmask = 1.0 - mask
    init_latent = jax.random.normal(ks[6], (B, C, H, W), jnp.float32)
    noise = jax.random.normal(ks[7], (B, C, H, W), jnp.float32)
    unet_w = jax.random.normal(ks[8], (D, C), jnp.float32) * 0.1

    denoiser = CFGDenoiser(mask=mask, nmask=nmask, init_latent=init_latent,
                           empty_prompt=empty_prompt, unet_w=unet_w,
                           need_last_noise_uncond=True)
    denoised = denoiser(x, sigma, uncond, cond, cond_scale=7.0,
                        s_min_uncond=0.0, image_cond=image_cond, noise=noise)
    jax.block_until_ready(denoised)
    jax.block_until_ready(denoiser.last_noise_uncond)

    assert denoised.shape == (B, C, H, W) and denoised.dtype == x.dtype
    assert bool(jnp.all(jnp.isfinite(denoised)))

    # Pure-JAX reference check of the fused kernel semantics (masked + lnu path).
    def reference():
        sig = sigma[:, None, None, None]
        xb = x * nmask + (init_latent + noise * sig) * mask
        unc_p = jnp.concatenate([uncond, jnp.tile(empty_prompt, (B, 1, 1))], axis=1)
        bc = 0.1 * jnp.tanh(jnp.mean(cond, axis=1) @ unet_w)
        bu = 0.1 * jnp.tanh(jnp.mean(unc_p, axis=1) @ unet_w)
        base = xb / (sig * sig + 1.0)
        cond_pred = base + bc[:, :, None, None]
        uncond_pred = base + bu[:, :, None, None]
        d = uncond_pred + (cond_pred - uncond_pred) * 7.0
        d = d * nmask + init_latent * mask
        lnu = (xb - uncond_pred) / sig
        return d, lnu

    ref_d, ref_lnu = reference()
    assert bool(jnp.allclose(denoised, ref_d, atol=1e-4, rtol=1e-4))
    assert bool(jnp.allclose(denoiser.last_noise_uncond, ref_lnu, atol=1e-4, rtol=1e-4))

    # Also exercise the no-inpainting / no-lnu kernel variant (mask is None path).
    denoiser2 = CFGDenoiser(mask=None, nmask=None, init_latent=None,
                            empty_prompt=empty_prompt, unet_w=unet_w,
                            need_last_noise_uncond=False)
    d2 = denoiser2(x, sigma, uncond, cond, cond_scale=5.0, s_min_uncond=0.0,
                   image_cond=image_cond, noise=noise)
    jax.block_until_ready(d2)
    assert d2.shape == (B, C, H, W) and bool(jnp.all(jnp.isfinite(d2)))

    def reference2():
        sig = sigma[:, None, None, None]
        unc_p = jnp.concatenate([uncond, jnp.tile(empty_prompt, (B, 1, 1))], axis=1)
        bc = 0.1 * jnp.tanh(jnp.mean(cond, axis=1) @ unet_w)
        bu = 0.1 * jnp.tanh(jnp.mean(unc_p, axis=1) @ unet_w)
        base = x / (sig * sig + 1.0)
        return base + (bu + (bc - bu) * 5.0)[:, :, None, None]

    assert bool(jnp.allclose(d2, reference2(), atol=1e-4, rtol=1e-4))

    print("KERNEL_OK")
</pallas_src>

<mosaic_0001>
module attributes {stable_mosaic.version = 11 : i64} {
  func.func @kernel(%arg0: i32, %arg1: memref<8x128xf32, #tpu.memory_space<vmem>>, %arg2: memref<8x128xf32, #tpu.memory_space<vmem>>, %arg3: memref<8x128xf32, #tpu.memory_space<vmem>>, %arg4: memref<8x128xf32, #tpu.memory_space<vmem>>, %arg5: memref<8x128xf32, #tpu.memory_space<vmem>>, %arg6: memref<8x128xf32, #tpu.memory_space<vmem>>, %arg7: memref<8x128xf32, #tpu.memory_space<vmem>>) attributes {dimension_semantics = [#tpu.dimension_semantics<parallel>], iteration_bounds = array<i64: 2>, scalar_prefetch = 0 : i64, scratch_operands = 0 : i64, tpu.core_type = #tpu.core_type<tc>, window_params = [{transform_indices = @transform_0, window_bounds = array<i64: 8, 128>}, {transform_indices = @transform_1, window_bounds = array<i64: 8, 128>}, {transform_indices = @transform_2, window_bounds = array<i64: 8, 128>}, {transform_indices = @transform_3, window_bounds = array<i64: 8, 128>}, {pipeline_mode = #tpu.pipeline_mode<synchronous>, transform_indices = @transform_4, window_bounds = array<i64: 8, 128>}, {transform_indices = @transform_5, window_bounds = array<i64: 8, 128>}, {transform_indices = @transform_6, window_bounds = array<i64: 8, 128>}]} {
    %c0 = arith.constant 0 : index
    %c0_0 = arith.constant 0 : index
    %0 = vector.load %arg5[%c0, %c0_0] : memref<8x128xf32, #tpu.memory_space<vmem>>, vector<8x128xf32>
    %1 = vector.extract_strided_slice %0 {offsets = [0, 1], sizes = [8, 1], strides = [1, 1]} : vector<8x128xf32> to vector<8x1xf32>
    %2 = vector.extract_strided_slice %0 {offsets = [0, 2], sizes = [8, 1], strides = [1, 1]} : vector<8x128xf32> to vector<8x1xf32>
    %c0_1 = arith.constant 0 : index
    %c0_2 = arith.constant 0 : index
    %3 = vector.load %arg1[%c0_1, %c0_2] : memref<8x128xf32, #tpu.memory_space<vmem>>, vector<8x128xf32>
    %4 = vector.extract_strided_slice %0 {offsets = [0, 0], sizes = [8, 1], strides = [1, 1]} : vector<8x128xf32> to vector<8x1xf32>
    %c0_3 = arith.constant 0 : index
    %c0_4 = arith.constant 0 : index
    %5 = vector.load %arg2[%c0_3, %c0_4] : memref<8x128xf32, #tpu.memory_space<vmem>>, vector<8x128xf32>
    %c0_5 = arith.constant 0 : index
    %c0_6 = arith.constant 0 : index
    %6 = vector.load %arg3[%c0_5, %c0_6] : memref<8x128xf32, #tpu.memory_space<vmem>>, vector<8x128xf32>
    %c0_7 = arith.constant 0 : index
    %c0_8 = arith.constant 0 : index
    %7 = vector.load %arg4[%c0_7, %c0_8] : memref<8x128xf32, #tpu.memory_space<vmem>>, vector<8x128xf32>
    %8 = vector.broadcast %4 : vector<8x1xf32> to vector<8x128xf32>
    %9 = arith.mulf %7, %8 : vector<8x128xf32>
    %10 = arith.addf %6, %9 : vector<8x128xf32>
    %11 = arith.subf %10, %3 : vector<8x128xf32>
    %12 = arith.mulf %11, %5 : vector<8x128xf32>
    %13 = arith.addf %3, %12 : vector<8x128xf32>
    %14 = vector.broadcast %1 : vector<8x1xf32> to vector<8x128xf32>
    %15 = arith.mulf %13, %14 : vector<8x128xf32>
    %16 = vector.broadcast %2 : vector<8x1xf32> to vector<8x128xf32>
    %17 = arith.addf %15, %16 : vector<8x128xf32>
    %18 = vector.extract_strided_slice %0 {offsets = [0, 3], sizes = [8, 1], strides = [1, 1]} : vector<8x128xf32> to vector<8x1xf32>
    %19 = vector.extract_strided_slice %0 {offsets = [0, 4], sizes = [8, 1], strides = [1, 1]} : vector<8x128xf32> to vector<8x1xf32>
    %20 = vector.broadcast %18 : vector<8x1xf32> to vector<8x128xf32>
    %21 = arith.mulf %13, %20 : vector<8x128xf32>
    %22 = vector.broadcast %19 : vector<8x1xf32> to vector<8x128xf32>
    %23 = arith.addf %21, %22 : vector<8x128xf32>
    %c0_9 = arith.constant 0 : index
    %c0_10 = arith.constant 0 : index
    %24 = vector.load %arg7[%c0_9, %c0_10] : memref<8x128xf32, #tpu.memory_space<vmem>>, vector<8x128xf32>
    tpu.vector_store %arg7[%c0_9, %c0_10], %23 {strides = array<i32>} : memref<8x128xf32, #tpu.memory_space<vmem>>, vector<8x128xf32>,
    %25 = arith.subf %6, %17 : vector<8x128xf32>
    %26 = arith.mulf %25, %5 : vector<8x128xf32>
    %27 = arith.addf %17, %26 : vector<8x128xf32>
    %c0_11 = arith.constant 0 : index
    %c0_12 = arith.constant 0 : index
    %28 = vector.load %arg6[%c0_11, %c0_12] : memref<8x128xf32, #tpu.memory_space<vmem>>, vector<8x128xf32>
    tpu.vector_store %arg6[%c0_11, %c0_12], %27 {strides = array<i32>} : memref<8x128xf32, #tpu.memory_space<vmem>>, vector<8x128xf32>,
    return
  }
  func.func @transform_0(%arg0: i32) -> (i32, i32) {
    %c0_i32 = arith.constant 0 : i32
    %c0_i32_0 = arith.constant 0 : i32
    return %c0_i32, %arg0 : i32, i32
  }
  func.func @transform_1(%arg0: i32) -> (i32, i32) {
    %c0_i32 = arith.constant 0 : i32
    %c0_i32_0 = arith.constant 0 : i32
    return %c0_i32, %arg0 : i32, i32
  }
  func.func @transform_2(%arg0: i32) -> (i32, i32) {
    %c0_i32 = arith.constant 0 : i32
    %c0_i32_0 = arith.constant 0 : i32
    return %c0_i32, %arg0 : i32, i32
  }
  func.func @transform_3(%arg0: i32) -> (i32, i32) {
    %c0_i32 = arith.constant 0 : i32
    %c0_i32_0 = arith.constant 0 : i32
    return %c0_i32, %arg0 : i32, i32
  }
  func.func @transform_4(%arg0: i32) -> (i32, i32) {
    %c0_i32 = arith.constant 0 : i32
    %c0_i32_0 = arith.constant 0 : i32
    %c0_i32_1 = arith.constant 0 : i32
    return %c0_i32, %c0_i32_0 : i32, i32
  }
  func.func @transform_5(%arg0: i32) -> (i32, i32) {
    %c0_i32 = arith.constant 0 : i32
    %c0_i32_0 = arith.constant 0 : i32
    return %c0_i32, %arg0 : i32, i32
  }
  func.func @transform_6(%arg0: i32) -> (i32, i32) {
    %c0_i32 = arith.constant 0 : i32
    %c0_i32_0 = arith.constant 0 : i32
    return %c0_i32, %arg0 : i32, i32
  }
}

</mosaic_0001>

<llo_original>
// kernel: tpu_custom_call.1
$region0: #{tpu_custom_call.1}
  #allocation0 [shape = 'u32[]', space=smem, size = 0x4, offset = 0x4, fixed_abs, tag = 'smem constant byte address 0x4 - core index']
  #allocation1 [shape = 'u32[144,128]{1,0:T(1,128)}', space=vmem, size = 0x12000, scoped, tag = 'internal scratch']
  %s0 = inlined_call_operand.hbm [shape: f32[8,256], index: 0, kind: input, shape index: {}]
  %s1 = inlined_call_operand.hbm [shape: f32[8,256], index: 1, kind: input, shape index: {}]
  %s2 = inlined_call_operand.hbm [shape: f32[8,256], index: 2, kind: input, shape index: {}]
  %s3 = inlined_call_operand.hbm [shape: f32[8,256], index: 3, kind: input, shape index: {}]
  %s4 = inlined_call_operand.hbm [shape: f32[8,128], index: 4, kind: input, shape index: {}]
  %s5 = inlined_call_operand.hbm [shape: f32[8,256], index: 5, kind: output, shape index: {0}]
  %s6 = inlined_call_operand.hbm [shape: f32[8,256], index: 6, kind: output, shape index: {1}]
  %7 = xla_tuple %s5, %s6
  %s8 = sld [smem:[#allocation0]]
  $region81: #{tpu_custom_call.1} parent=0
    _
  %s10 = ssub.s32 1, %s8
  %s11 = scalar_select 0, %s10, %s8
  $region1: #{tpu_custom_call.1} parent=0
    #allocation2 [shape = 'u8[8192]{0}', space=vmem, size = 0x2000, scoped, tag = 'input window, operand 0']
    #allocation3 [shape = 's32[2]{0}', space=sflag, size = 0x8, scoped, tag = 'scoped memory for tpu_custom_call.1']
    #allocation4 [shape = 's32[2]{0}', space=sflag, size = 0x8, scoped, tag = 'scoped memory for tpu_custom_call.1']
    #allocation5 [shape = 'u8[8192]{0}', space=vmem, size = 0x2000, scoped, tag = 'input window, operand 1']
    #allocation6 [shape = 's32[2]{0}', space=sflag, size = 0x8, scoped, tag = 'scoped memory for tpu_custom_call.1']
    #allocation7 [shape = 'u8[8192]{0}', space=vmem, size = 0x2000, scoped, tag = 'input window, operand 2']
    #allocation8 [shape = 'u8[8192]{0}', space=vmem, size = 0x2000, scoped, tag = 'input window, operand 3']
    #allocation9 [shape = 's32[2]{0}', space=sflag, size = 0x8, scoped, tag = 'scoped memory for tpu_custom_call.1']
    #allocation10 [shape = 'u8[4096]{0}', space=vmem, size = 0x1000, scoped, tag = 'input window, operand 4, single buffered']
    #allocation11 [shape = 'u8[8192]{0}', space=vmem, size = 0x2000, scoped, tag = 'output window, operand 0']
    #allocation12 [shape = 'u8[8192]{0}', space=vmem, size = 0x2000, scoped, tag = 'output window, operand 1']
    #allocation13 [shape = 's32[2]{0}', space=sflag, size = 0x8, scoped, tag = 'scoped memory for tpu_custom_call.1']
    %12 = vsyncpa [#allocation3], 0
    %s13 = scalar_lea.sflag [#allocation3], 1
    %14 = vsyncpa %s13, 0
    %15 = vsyncpa [#allocation6], 0
    %s16 = scalar_lea.sflag [#allocation6], 1
    %17 = vsyncpa %s16, 0
    %18 = vsyncpa [#allocation9], 0
    %s19 = scalar_lea.sflag [#allocation9], 1
    %20 = vsyncpa %s19, 0
    %21 = vsyncpa [#allocation4], 0
    %s22 = scalar_lea.sflag [#allocation4], 1
    %23 = vsyncpa %s22, 0
    %24 = vsyncpa [#allocation13], 0
    %s25 = scalar_lea.sflag [#allocation13], 1
    %26 = vsyncpa %s25, 0
    loop: start=0, step=1, limit=4
    $region2: #{tpu_custom_call.1} parent=1 // loop_pre_header
      _
    $region3: #{tpu_custom_call.1} parent=1 // loop_header
      %s28 = sphi 0, %s32
      %p29 = scmp.ge.s32.totalorder %s28, 4
      %s38 = sphi 0, %s40
      %s41 = sphi 0, %s38
      %s42 = sphi 0, %s41
      %s58 = sphi 0, %s42
      %s64 = sphi 0, %s66
      %s67 = sphi 0, %s64
      %s68 = sphi 0, %s67
      %s84 = sphi 0, %s68
      %s90 = sphi 0, %s92
      %s93 = sphi 0, %s90
      %s94 = sphi 0, %s93
      %s110 = sphi 0, %s94
      %s116 = sphi 0, %s118
      %s119 = sphi 0, %s116
      %s120 = sphi 0, %s119
      %s136 = sphi 0, %s120
      %s140 = sphi 0, %s140
      %s142 = sphi 0, %s140
      %s143 = sphi 0, %s142
      %s157 = sphi 0, %s143
      %s163 = sphi 0, %s165
      %s166 = sphi 0, %s163
      %s167 = sphi 0, %s166
      %s183 = sphi 0, %s167
      %s189 = sphi 0, %s191
      %s192 = sphi 0, %s189
      %s193 = sphi 0, %s192
      %s209 = sphi 0, %s193
    $region4: #{tpu_custom_call.1} parent=1 // loop_header_branch
      %31 = sbr.rel (%p29) target = $region8
    $region5: #{tpu_custom_call.1} parent=1 // loop_body
      %s33 = ssub.s32 %s28, 1
      %s34 = ssub.s32 %s28, 2
      %s35 = sadd.s32 %s28, 1
      %s36 = ssub.s32 %s28, %s35
      %p37 = scmp.eq.s32.totalorder %s36, 0
      %s39 = sadd.s32 %s38, 1
      %s40 = scalar_select %p37, %s38, %s39
      %p43 = pneg %p37
      %p44 = scmp.eq.s32.totalorder %s28, 1
      %p45 = por %p43, %p44
      %p46 = scmp.ne.s32.totalorder %s38, %s41
      %p47 = scmp.eq.s32.totalorder %s28, 0
      %p48 = por %p46, %p47
      %p49 = scmp.ne.s32.totalorder %s38, %s41
      %p50 = scmp.eq.s32.totalorder %s33, 1
      %p51 = por %p49, %p50
      %p52 = scmp.ne.s32.totalorder %s41, %s42
      %p53 = scmp.eq.s32.totalorder %s33, 0
      %p54 = por %p52, %p53
      %p55 = scmp.ne.s32.totalorder %s41, %s42
      %p56 = scmp.eq.s32.totalorder %s34, 1
      %p57 = por %p55, %p56
      %p59 = scmp.ne.s32.totalorder %s42, %s58
      %p60 = scmp.eq.s32.totalorder %s34, 0
      %p61 = por %p59, %p60
      %s62 = ssub.s32 %s28, %s35
      %p63 = scmp.eq.s32.totalorder %s62, 0
      %s65 = sadd.s32 %s64, 1
      %s66 = scalar_select %p63, %s64, %s65
      %p69 = pneg %p63
      %p70 = scmp.eq.s32.totalorder %s28, 1
      %p71 = por %p69, %p70
      %p72 = scmp.ne.s32.totalorder %s64, %s67
      %p73 = scmp.eq.s32.totalorder %s28, 0
      %p74 = por %p72, %p73
      %p75 = scmp.ne.s32.totalorder %s64, %s67
      %p76 = scmp.eq.s32.totalorder %s33, 1
      %p77 = por %p75, %p76
      %p78 = scmp.ne.s32.totalorder %s67, %s68
      %p79 = scmp.eq.s32.totalorder %s33, 0
      %p80 = por %p78, %p79
      %p81 = scmp.ne.s32.totalorder %s67, %s68
      %p82 = scmp.eq.s32.totalorder %s34, 1
      %p83 = por %p81, %p82
      %p85 = scmp.ne.s32.totalorder %s68, %s84
      %p86 = scmp.eq.s32.totalorder %s34, 0
      %p87 = por %p85, %p86
      %s88 = ssub.s32 %s28, %s35
      %p89 = scmp.eq.s32.totalorder %s88, 0
      %s91 = sadd.s32 %s90, 1
      %s92 = scalar_select %p89, %s90, %s91
      %p95 = pneg %p89
      %p96 = scmp.eq.s32.totalorder %s28, 1
      %p97 = por %p95, %p96
      %p98 = scmp.ne.s32.totalorder %s90, %s93
      %p99 = scmp.eq.s32.totalorder %s28, 0
      %p100 = por %p98, %p99
      %p101 = scmp.ne.s32.totalorder %s90, %s93
      %p102 = scmp.eq.s32.totalorder %s33, 1
      %p103 = por %p101, %p102
      %p104 = scmp.ne.s32.totalorder %s93, %s94
      %p105 = scmp.eq.s32.totalorder %s33, 0
      %p106 = por %p104, %p105
      %p107 = scmp.ne.s32.totalorder %s93, %s94
      %p108 = scmp.eq.s32.totalorder %s34, 1
      %p109 = por %p107, %p108
      %p111 = scmp.ne.s32.totalorder %s94, %s110
      %p112 = scmp.eq.s32.totalorder %s34, 0
      %p113 = por %p111, %p112
      %s114 = ssub.s32 %s28, %s35
      %p115 = scmp.eq.s32.totalorder %s114, 0
      %s117 = sadd.s32 %s116, 1
      %s118 = scalar_select %p115, %s116, %s117
      %p121 = pneg %p115
      %p122 = scmp.eq.s32.totalorder %s28, 1
      %p123 = por %p121, %p122
      %p124 = scmp.ne.s32.totalorder %s116, %s119
      %p125 = scmp.eq.s32.totalorder %s28, 0
      %p126 = por %p124, %p125
      %p127 = scmp.ne.s32.totalorder %s116, %s119
      %p128 = scmp.eq.s32.totalorder %s33, 1
      %p129 = por %p127, %p128
      %p130 = scmp.ne.s32.totalorder %s119, %s120
      %p131 = scmp.eq.s32.totalorder %s33, 0
      %p132 = por %p130, %p131
      %p133 = scmp.ne.s32.totalorder %s119, %s120
      %p134 = scmp.eq.s32.totalorder %s34, 1
      %p135 = por %p133, %p134
      %p137 = scmp.ne.s32.totalorder %s120, %s136
      %p138 = scmp.eq.s32.totalorder %s34, 0
      %p139 = por %p137, %p138
      %s141 = sadd.s32 %s140, 1
      %p144 = scmp.eq.s32.totalorder %s28, 1
      %p145 = scmp.ne.s32.totalorder %s140, %s142
      %p146 = scmp.eq.s32.totalorder %s28, 0
      %p147 = por %p145, %p146
      %p148 = scmp.ne.s32.totalorder %s140, %s142
      %p149 = scmp.eq.s32.totalorder %s33, 1
      %p150 = por %p148, %p149
      %p151 = scmp.ne.s32.totalorder %s142, %s143
      %p152 = scmp.eq.s32.totalorder %s33, 0
      %p153 = por %p151, %p152
      %p154 = scmp.ne.s32.totalorder %s142, %s143
      %p155 = scmp.eq.s32.totalorder %s34, 1
      %p156 = por %p154, %p155
      %p158 = scmp.ne.s32.totalorder %s143, %s157
      %p159 = scmp.eq.s32.totalorder %s34, 0
      %p160 = por %p158, %p159
      %s161 = ssub.s32 %s28, %s35
      %p162 = scmp.eq.s32.totalorder %s161, 0
      %s164 = sadd.s32 %s163, 1
      %s165 = scalar_select %p162, %s163, %s164
      %p168 = pneg %p162
      %p169 = scmp.eq.s32.totalorder %s28, 1
      %p170 = por %p168, %p169
      %p171 = scmp.ne.s32.totalorder %s163, %s166
      %p172 = scmp.eq.s32.totalorder %s28, 0
      %p173 = por %p171, %p172
      %p174 = scmp.ne.s32.totalorder %s163, %s166
      %p175 = scmp.eq.s32.totalorder %s33, 1
      %p176 = por %p174, %p175
      %p177 = scmp.ne.s32.totalorder %s166, %s167
      %p178 = scmp.eq.s32.totalorder %s33, 0
      %p179 = por %p177, %p178
      %p180 = scmp.ne.s32.totalorder %s166, %s167
      %p181 = scmp.eq.s32.totalorder %s34, 1
      %p182 = por %p180, %p181
      %p184 = scmp.ne.s32.totalorder %s167, %s183
      %p185 = scmp.eq.s32.totalorder %s34, 0
      %p186 = por %p184, %p185
      %s187 = ssub.s32 %s28, %s35
      %p188 = scmp.eq.s32.totalorder %s187, 0
      %s190 = sadd.s32 %s189, 1
      %s191 = scalar_select %p188, %s189, %s190
      %p194 = pneg %p188
      %p195 = scmp.eq.s32.totalorder %s28, 1
      %p196 = por %p194, %p195
      %p197 = scmp.ne.s32.totalorder %s189, %s192
      %p198 = scmp.eq.s32.totalorder %s28, 0
      %p199 = por %p197, %p198
      %p200 = scmp.ne.s32.totalorder %s189, %s192
      %p201 = scmp.eq.s32.totalorder %s33, 1
      %p202 = por %p200, %p201
      %p203 = scmp.ne.s32.totalorder %s192, %s193
      %p204 = scmp.eq.s32.totalorder %s33, 0
      %p205 = por %p203, %p204
      %p206 = scmp.ne.s32.totalorder %s192, %s193
      %p207 = scmp.eq.s32.totalorder %s34, 1
      %p208 = por %p206, %p207
      %p210 = scmp.ne.s32.totalorder %s193, %s209
      %p211 = scmp.eq.s32.totalorder %s34, 0
      %p212 = por %p210, %p211
      %p213 = scmp.le.s32.totalorder 1, %s28
      %p214 = scmp.lt.s32.totalorder %s28, 3
      %p215 = pnand %p213, %p214
      %p216 = pneg %p215
      // Predicated region
      $region9: #{tpu_custom_call.1} parent=5 // pred_check
        _
      $region10: #{tpu_custom_call.1} parent=5 // pred_check_branch
        %218 = sbr.rel (%p215) target = $region12
      $region11: #{tpu_custom_call.1} parent=5 // pred_region
        %s219 = ssub.s32 %s28, 1
        // Predicated region
        $region13: #{tpu_custom_call.1} parent=11 // pred_check
          %p220 = pneg %p153
        $region14: #{tpu_custom_call.1} parent=11 // pred_check_branch
          %222 = sbr.rel (%p220) target = $region16
        $region15: #{tpu_custom_call.1} parent=11 // pred_region
          %s224 = ssub.s32 128, 128
          %225 = vsyncadd [#allocation9], %s224
          %s227 = sshll.u32 [#allocation10], 4
          %s228 = int_to_ptr.vmem [resolvable:$true] %s227
          %230 = dma.hbm_to_vmem [thread:$0]  %s4, 128, %s228, [#allocation9]
        $region16: #{tpu_custom_call.1} parent=11 // pred_fallthru
          _
      $region12: #{tpu_custom_call.1} parent=5 // pred_fallthru
        _
      %p231 = scmp.lt.s32.totalorder %s28, 2
      // Predicated region
      $region17: #{tpu_custom_call.1} parent=5 // pred_check
        %p232 = pneg %p231
      $region18: #{tpu_custom_call.1} parent=5 // pred_check_branch
        %234 = sbr.rel (%p232) target = $region20
      $region19: #{tpu_custom_call.1} parent=5 // pred_region
        // Predicated region
        $region21: #{tpu_custom_call.1} parent=19 // pred_check
          %p235 = pneg %p48
        $region22: #{tpu_custom_call.1} parent=19 // pred_check_branch
          %237 = sbr.rel (%p235) target = $region24
        $region23: #{tpu_custom_call.1} parent=19 // pred_region
          %s238 = sand.u32 %s38, 1
          %s239 = scalar_lea.sflag [#allocation3], %s238
          %s240 = sand.u32 %s38, 1
          %s241 = smul.addr %s240, 8
          %s242 = scalar_lea.vmem [#allocation2], %s241
          %s244 = ssub.s32 128, 128
          %245 = vsyncadd %s239, %s244
          %s246 = smul.addr %s28, 128
          %s247 = scalar_lea.hbm %s0, %s246
          %s249 = sshll.u32 %s242, 4
          %s250 = int_to_ptr.vmem [resolvable:$true] %s249
          %252 = dma.hbm_to_vmem [thread:$0]  %s247, 128, %s250, %s239
        $region24: #{tpu_custom_call.1} parent=19 // pred_fallthru
          _
        // Predicated region
        $region25: #{tpu_custom_call.1} parent=19 // pred_check
          %p253 = pneg %p74
        $region26: #{tpu_custom_call.1} parent=19 // pred_check_branch
          %255 = sbr.rel (%p253) target = $region28
        $region27: #{tpu_custom_call.1} parent=19 // pred_region
          %s256 = sand.u32 %s28, 1
          %s257 = scalar_lea.sflag [#allocation6], %s256
          %s258 = sand.u32 %s64, 1
          %s259 = smul.addr %s258, 8
          %s260 = scalar_lea.vmem [#allocation5], %s259
          %s262 = ssub.s32 128, 128
          %263 = vsyncadd %s257, %s262
          %s264 = smul.addr %s28, 128
          %s265 = scalar_lea.hbm %s1, %s264
          %s267 = sshll.u32 %s260, 4
          %s268 = int_to_ptr.vmem [resolvable:$true] %s267
          %270 = dma.hbm_to_vmem [thread:$0]  %s265, 128, %s268, %s257
        $region28: #{tpu_custom_call.1} parent=19 // pred_fallthru
          _
        // Predicated region
        $region29: #{tpu_custom_call.1} parent=19 // pred_check
          %p271 = pneg %p100
        $region30: #{tpu_custom_call.1} parent=19 // pred_check_branch
          %273 = sbr.rel (%p271) target = $region32
        $region31: #{tpu_custom_call.1} parent=19 // pred_region
          %s274 = sand.u32 %s28, 1
          %s275 = scalar_lea.sflag [#allocation6], %s274
          %s276 = sand.u32 %s90, 1
          %s277 = smul.addr %s276, 8
          %s278 = scalar_lea.vmem [#allocation7], %s277
          %s280 = ssub.s32 128, 128
          %281 = vsyncadd %s275, %s280
          %s282 = smul.addr %s28, 128
          %s283 = scalar_lea.hbm %s2, %s282
          %s285 = sshll.u32 %s278, 4
          %s286 = int_to_ptr.vmem [resolvable:$true] %s285
          %288 = dma.hbm_to_vmem [thread:$0]  %s283, 128, %s286, %s275
        $region32: #{tpu_custom_call.1} parent=19 // pred_fallthru
          _
        // Predicated region
        $region33: #{tpu_custom_call.1} parent=19 // pred_check
          %p289 = pneg %p126
        $region34: #{tpu_custom_call.1} parent=19 // pred_check_branch
          %291 = sbr.rel (%p289) target = $region36
        $region35: #{tpu_custom_call.1} parent=19 // pred_region
          %s292 = sand.u32 %s28, 1
          %s293 = scalar_lea.sflag [#allocation9], %s292
          %s294 = sand.u32 %s116, 1
          %s295 = smul.addr %s294, 8
          %s296 = scalar_lea.vmem [#allocation8], %s295
          %s298 = ssub.s32 128, 128
          %299 = vsyncadd %s293, %s298
          %s300 = smul.addr %s28, 128
          %s301 = scalar_lea.hbm %s3, %s300
          %s303 = sshll.u32 %s296, 4
          %s304 = int_to_ptr.vmem [resolvable:$true] %s303
          %306 = dma.hbm_to_vmem [thread:$0]  %s301, 128, %s304, %s293
        $region36: #{tpu_custom_call.1} parent=19 // pred_fallthru
          _
      $region20: #{tpu_custom_call.1} parent=5 // pred_fallthru
        _
      %p307 = scmp.le.s32.totalorder 1, %s28
      %p308 = scmp.lt.s32.totalorder %s28, 3
      %p309 = pnand %p307, %p308
      %p310 = pneg %p309
      // Predicated region
      $region37: #{tpu_custom_call.1} parent=5 // pred_check
        _
      $region38: #{tpu_custom_call.1} parent=5 // pred_check_branch
        %312 = sbr.rel (%p309) target = $region40
      $region39: #{tpu_custom_call.1} parent=5 // pred_region
        %s313 = ssub.s32 %s28, 1
        %s314 = sand.u32 %s41, 1
        %s315 = scalar_lea.sflag [#allocation3], %s314
        %s316 = sand.u32 %s41, 1
        %s317 = smul.addr %s316, 8
        %s318 = scalar_lea.vmem [#allocation2], %s317
        // Predicated region
        $region41: #{tpu_custom_call.1} parent=39 // pred_check
          %p319 = pneg %p54
        $region42: #{tpu_custom_call.1} parent=39 // pred_check_branch
          %321 = sbr.rel (%p319) target = $region44
        $region43: #{tpu_custom_call.1} parent=39 // pred_region
          %322 = dma.done %s315, 128
        $region44: #{tpu_custom_call.1} parent=39 // pred_fallthru
          _
        %s323 = sand.u32 %s33, 1
        %s324 = scalar_lea.sflag [#allocation6], %s323
        %s325 = sand.u32 %s67, 1
        %s326 = smul.addr %s325, 8
        %s327 = scalar_lea.vmem [#allocation5], %s326
        // Predicated region
        $region45: #{tpu_custom_call.1} parent=39 // pred_check
          %p328 = pneg %p80
        $region46: #{tpu_custom_call.1} parent=39 // pred_check_branch
          %330 = sbr.rel (%p328) target = $region48
        $region47: #{tpu_custom_call.1} parent=39 // pred_region
          %331 = dma.done %s324, 128
        $region48: #{tpu_custom_call.1} parent=39 // pred_fallthru
          _
        %s332 = sand.u32 %s33, 1
        %s333 = scalar_lea.sflag [#allocation6], %s332
        %s334 = sand.u32 %s93, 1
        %s335 = smul.addr %s334, 8
        %s336 = scalar_lea.vmem [#allocation7], %s335
        // Predicated region
        $region49: #{tpu_custom_call.1} parent=39 // pred_check
          %p337 = pneg %p106
        $region50: #{tpu_custom_call.1} parent=39 // pred_check_branch
          %339 = sbr.rel (%p337) target = $region52
        $region51: #{tpu_custom_call.1} parent=39 // pred_region
          %340 = dma.done %s333, 128
        $region52: #{tpu_custom_call.1} parent=39 // pred_fallthru
          _
        %s341 = sand.u32 %s33, 1
        %s342 = scalar_lea.sflag [#allocation9], %s341
        %s343 = sand.u32 %s119, 1
        %s344 = smul.addr %s343, 8
        %s345 = scalar_lea.vmem [#allocation8], %s344
        // Predicated region
        $region53: #{tpu_custom_call.1} parent=39 // pred_check
          %p346 = pneg %p132
        $region54: #{tpu_custom_call.1} parent=39 // pred_check_branch
          %348 = sbr.rel (%p346) target = $region56
        $region55: #{tpu_custom_call.1} parent=39 // pred_region
          %349 = dma.done %s342, 128
        $region56: #{tpu_custom_call.1} parent=39 // pred_fallthru
          _
        // Predicated region
        $region57: #{tpu_custom_call.1} parent=39 // pred_check
          %p350 = pneg %p153
        $region58: #{tpu_custom_call.1} parent=39 // pred_check_branch
          %352 = sbr.rel (%p350) target = $region60
        $region59: #{tpu_custom_call.1} parent=39 // pred_region
          %353 = dma.done [#allocation9], 128
        $region60: #{tpu_custom_call.1} parent=39 // pred_fallthru
          _
        %s354 = sand.u32 %s41, 1
        %s355 = scalar_lea.sflag [#allocation3], %s354
        %s356 = sand.u32 %s41, 1
        %s357 = smul.addr %s356, 8
        %s358 = scalar_lea.vmem [#allocation2], %s357
        %p359 = pneg %p54
        %p360 = pneg %p51
        %s361 = sand.u32 %s33, 1
        %s362 = scalar_lea.sflag [#allocation6], %s361
        %s363 = sand.u32 %s67, 1
        %s364 = smul.addr %s363, 8
        %s365 = scalar_lea.vmem [#allocation5], %s364
        %p366 = pneg %p80
        %p367 = pneg %p77
        %s368 = sand.u32 %s33, 1
        %s369 = scalar_lea.sflag [#allocation6], %s368
        %s370 = sand.u32 %s93, 1
        %s371 = smul.addr %s370, 8
        %s372 = scalar_lea.vmem [#allocation7], %s371
        %p373 = pneg %p106
        %p374 = pneg %p103
        %s375 = sand.u32 %s33, 1
        %s376 = scalar_lea.sflag [#allocation9], %s375
        %s377 = sand.u32 %s119, 1
        %s378 = smul.addr %s377, 8
        %s379 = scalar_lea.vmem [#allocation8], %s378
        %p380 = pneg %p132
        %p381 = pneg %p129
        %p382 = pneg %p153
        %p383 = pneg %p150
        %p384 = pneg %p179
        %p385 = pneg %p176
        %s386 = sand.u32 %s166, 1
        %s387 = scalar_lea.sflag [#allocation4], %s386
        %s388 = sand.u32 %s166, 1
        %s389 = smul.addr %s388, 8
        %s390 = scalar_lea.vmem [#allocation11], %s389
        %p391 = pneg %p205
        %p392 = pneg %p202
        %s393 = sand.u32 %s192, 1
        %s394 = scalar_lea.sflag [#allocation13], %s393
        %s395 = sand.u32 %s192, 1
        %s396 = smul.addr %s395, 8
        %s397 = scalar_lea.vmem [#allocation12], %s396
        %v398 = vld [vmem:[#allocation10] sm:$0xff]
        %v399 = vld [vmem:[%s318] sm:$0xff]
        %v400 = vld [vmem:[%s327] sm:$0xff]
        %v401 = vld [vmem:[%s336] sm:$0xff]
        %v402 = vld [vmem:[%s345] sm:$0xff]
        %404 = vset.pattern.permute.xlu0 0
        %405 = vperm.xlu0 %404, %v398
        %v406 = vpop.permute.xlu0 %405
        %v408 = vmul.f32 %v402, %v406
        %v409 = vadd.f32 %v401, %v408
        %v410 = vsub.f32 %v409, %v399
        %v411 = vmul.f32 %v410, %v400
        %v412 = vadd.f32 %v399, %v411
        %413 = vset.pattern.permute.xlu0 1
        %414 = vperm.xlu0 %413, %v398
        %v415 = vpop.permute.xlu0 %414
        %v417 = vmul.f32 %v412, %v415
        %418 = vset.pattern.permute.xlu0 2
        %419 = vperm.xlu0 %418, %v398
        %v420 = vpop.permute.xlu0 %419
        %v422 = vadd.f32 %v417, %v420
        %423 = vset.pattern.permute.xlu0 3
        %424 = vperm.xlu0 %423, %v398
        %v425 = vpop.permute.xlu0 %424
        %v427 = vmul.f32 %v412, %v425
        %428 = vset.pattern.permute.xlu0 4
        %429 = vperm.xlu0 %428, %v398
        %v430 = vpop.permute.xlu0 %429
        %v432 = vadd.f32 %v427, %v430
        %433 = vst [vmem:[%s397] sm:$0xff] %v432
        %v434 = vsub.f32 %v401, %v422
        %v435 = vmul.f32 %v434, %v400
        %v436 = vadd.f32 %v422, %v435
        %437 = vst [vmem:[%s390] sm:$0xff] %v436
        %s438 = sand.u32 %s166, 1
        %s439 = scalar_lea.sflag [#allocation4], %s438
        %s440 = sand.u32 %s166, 1
        %s441 = smul.addr %s440, 8
        %s442 = scalar_lea.vmem [#allocation11], %s441
        %s443 = sand.u32 %s192, 1
        %s444 = scalar_lea.sflag [#allocation13], %s443
        %s445 = sand.u32 %s192, 1
        %s446 = smul.addr %s445, 8
        %s447 = scalar_lea.vmem [#allocation12], %s446
        // Predicated region
        $region61: #{tpu_custom_call.1} parent=39 // pred_check
          %p448 = pneg %p176
        $region62: #{tpu_custom_call.1} parent=39 // pred_check_branch
          %450 = sbr.rel (%p448) target = $region64
        $region63: #{tpu_custom_call.1} parent=39 // pred_region
          %s452 = ssub.s32 128, 128
          %453 = vsyncadd %s439, %s452
          %s454 = smul.addr %s33, 128
          %s455 = scalar_lea.hbm %s5, %s454
          %s457 = sshll.u32 %s442, 4
          %s458 = int_to_ptr.vmem [resolvable:$true] %s457
          %460 = dma.vmem_to_hbm [thread:$0]  %s458, 128, %s455, %s439
        $region64: #{tpu_custom_call.1} parent=39 // pred_fallthru
          _
        // Predicated region
        $region65: #{tpu_custom_call.1} parent=39 // pred_check
          %p461 = pneg %p202
        $region66: #{tpu_custom_call.1} parent=39 // pred_check_branch
          %463 = sbr.rel (%p461) target = $region68
        $region67: #{tpu_custom_call.1} parent=39 // pred_region
          %s465 = ssub.s32 128, 128
          %466 = vsyncadd %s444, %s465
          %s467 = smul.addr %s33, 128
          %s468 = scalar_lea.hbm %s6, %s467
          %s470 = sshll.u32 %s447, 4
          %s471 = int_to_ptr.vmem [resolvable:$true] %s470
          %473 = dma.vmem_to_hbm [thread:$0]  %s471, 128, %s468, %s444
        $region68: #{tpu_custom_call.1} parent=39 // pred_fallthru
          _
      $region40: #{tpu_custom_call.1} parent=5 // pred_fallthru
        _
      %p474 = scmp.le.s32.totalorder 2, %s28
      // Predicated region
      $region69: #{tpu_custom_call.1} parent=5 // pred_check
        %p475 = pneg %p474
      $region70: #{tpu_custom_call.1} parent=5 // pred_check_branch
        %477 = sbr.rel (%p475) target = $region72
      $region71: #{tpu_custom_call.1} parent=5 // pred_region
        %s478 = ssub.s32 %s28, 2
        // Predicated region
        $region73: #{tpu_custom_call.1} parent=71 // pred_check
          %p479 = pneg %p182
        $region74: #{tpu_custom_call.1} parent=71 // pred_check_branch
          %481 = sbr.rel (%p479) target = $region76
        $region75: #{tpu_custom_call.1} parent=71 // pred_region
          %s482 = sand.u32 %s167, 1
          %s483 = scalar_lea.sflag [#allocation4], %s482
          %s484 = sand.u32 %s167, 1
          %s485 = smul.addr %s484, 8
          %s486 = scalar_lea.vmem [#allocation11], %s485
          %487 = dma.done %s483, 128
        $region76: #{tpu_custom_call.1} parent=71 // pred_fallthru
          _
        // Predicated region
        $region77: #{tpu_custom_call.1} parent=71 // pred_check
          %p488 = pneg %p208
        $region78: #{tpu_custom_call.1} parent=71 // pred_check_branch
          %490 = sbr.rel (%p488) target = $region80
        $region79: #{tpu_custom_call.1} parent=71 // pred_region
          %s491 = sand.u32 %s193, 1
          %s492 = scalar_lea.sflag [#allocation13], %s491
          %s493 = sand.u32 %s193, 1
          %s494 = smul.addr %s493, 8
          %s495 = scalar_lea.vmem [#allocation12], %s494
          %496 = dma.done %s492, 128
        $region80: #{tpu_custom_call.1} parent=71 // pred_fallthru
          _
      $region72: #{tpu_custom_call.1} parent=5 // pred_fallthru
        _
    $region6: #{tpu_custom_call.1} parent=1 // loop_footer
      %s32 = sadd.s32 1, %s28
    $region7: #{tpu_custom_call.1} parent=1 // loop_footer_branch
      %27 = sbr.rel target = $region3
    $region8: #{tpu_custom_call.1} parent=1 // loop_exit
      _
    %497 = vsyncpa [#allocation3], 1
    %s498 = scalar_lea.sflag [#allocation3], 1
    %499 = vsyncpa %s498, 1
    %500 = vsyncpa [#allocation6], 1
    %s501 = scalar_lea.sflag [#allocation6], 1
    %502 = vsyncpa %s501, 1
    %503 = vsyncpa [#allocation9], 1
    %s504 = scalar_lea.sflag [#allocation9], 1
    %505 = vsyncpa %s504, 1
    %506 = vsyncpa [#allocation4], 1
    %s507 = scalar_lea.sflag [#allocation4], 1
    %508 = vsyncpa %s507, 1
    %509 = vsyncpa [#allocation13], 1
    %s510 = scalar_lea.sflag [#allocation13], 1
    %511 = vsyncpa %s510, 1

</llo_original>
